<compile_context>
chip_gen: v6e
topology: v6e:2x2x1
jax: 0.10.0
libtpu: 0.0.40
codegen_flags: <defaults>
</compile_context>

<pallas_src>
import functools

import jax
import jax.numpy as jnp
from jax.experimental import pallas as pl
from jax.experimental.pallas import tpu as pltpu


# ---------------------------------------------------------------------------
# Kernels
# ---------------------------------------------------------------------------

def _project_kernel(x_ref, w_ref, h_ref):
    """h_all tile = x tile @ W_all (all heads fused), bf16 MXU, f32 accumulate."""
    x = x_ref[...].astype(jnp.bfloat16)          # (TM, F_in)
    w = w_ref[...].astype(jnp.bfloat16)          # (F_in, H*D)
    h_ref[...] = jnp.dot(x, w, preferred_element_type=jnp.float32)


def _attention_kernel(adj_ref, hq_ref, hk_ref, a1m_ref, a2m_ref, o_ref,
                      *, alpha, nheads, d):
    """All-heads sparse attention for one row tile of query nodes.

    Per head h (dense equivalent of the edge formulation):
      e_ij  = exp(-leakyrelu(a1_h.h_i + a2_h.h_j))  where adj[i, j] != 0
      out_i = ELU( (sum_j e_ij * h_j) / (sum_j e_ij) )
    """
    adj = adj_ref[...]                           # (TM, N) int8 mask
    hq = hq_ref[...]                             # (TM, H*D) f32, query rows
    hk = hk_ref[...]                             # (N,  H*D) f32, all key rows
    a1m = a1m_ref[...]                           # (H*D, H) block-diag a1
    a2m = a2m_ref[...]                           # (H*D, H) block-diag a2

    # f1[i, h] = a1_h . h_i ; f2[j, h] = a2_h . h_j   (all heads in one matmul each)
    f1 = jnp.dot(hq, a1m, preferred_element_type=jnp.float32)    # (TM, H)
    f2 = jnp.dot(hk, a2m, preferred_element_type=jnp.float32)    # (N, H)

    mask = adj != 0
    hk_bf = hk.astype(jnp.bfloat16)

    outs = []
    for h in range(nheads):
        f2_row = jnp.transpose(f2[:, h:h + 1])                   # (1, N)
        logits = f1[:, h:h + 1] + f2_row                         # (TM, N)
        leaky = jnp.where(logits > 0, logits, alpha * logits)    # LeakyReLU(alpha)
        # where() before the multiply: masked entries never see an overflowed exp.
        e = jnp.where(mask, jnp.exp(-leaky), 0.0)                # (TM, N)
        rowsum = jnp.sum(e, axis=1, keepdims=True)               # (TM, 1)
        rowsum = jnp.where(rowsum > 0, rowsum, 1.0)              # guard isolated rows
        num = jnp.dot(e.astype(jnp.bfloat16), hk_bf[:, h * d:(h + 1) * d],
                      preferred_element_type=jnp.float32)        # (TM, D)
        outs.append(num * pl.reciprocal(rowsum))                 # exact 1/x on EUP

    hp = jnp.concatenate(outs, axis=1)                           # (TM, H*D)
    # concat=True => ELU (alpha = 1.0); single lane-dense store.
    o_ref[...] = jnp.where(hp > 0, hp,
                           jnp.exp(jnp.minimum(hp, 0.0)) - 1.0).astype(o_ref.dtype)


# ---------------------------------------------------------------------------
# Layer wrapper
# ---------------------------------------------------------------------------

def _pick_block_m(n, target=256):
    """Row-tile size: whole graph if small, else a multiple of 32 dividing N."""
    if n <= target:
        return n
    for bm in (256, 128, 64, 32):
        if n % bm == 0:
            return bm
    return n


def sp_gat_layer(x, adj_i8, w, a, alpha):
    """All nheads SpGraphAttentionLayer heads fused; output already (N, nheads*D)."""
    nheads, f_in, d = w.shape
    n = x.shape[0]
    hd = nheads * d

    # Stack per-head weights: columns [h*D:(h+1)*D] of W_all belong to head h.
    w_all = jnp.transpose(w, (1, 0, 2)).reshape(f_in, hd)
    # Block-diagonal (H*D, H) matrices so f1/f2 for all heads are one matmul each.
    a1 = a[:, 0, :d]                                             # (H, D)
    a2 = a[:, 0, d:]                                             # (H, D)
    eye = jnp.eye(nheads, dtype=jnp.float32)
    a1m = (a1[:, :, None] * eye[:, None, :]).reshape(hd, nheads)
    a2m = (a2[:, :, None] * eye[:, None, :]).reshape(hd, nheads)

    bm = _pick_block_m(n)
    grid = (n // bm,)
    cparams = pltpu.CompilerParams(
        dimension_semantics=("parallel",),
        vmem_limit_bytes=64 * 1024 * 1024,
    )

    # Kernel A: fused projection h_all = x @ W_all.
    h_all = pl.pallas_call(
        _project_kernel,
        out_shape=jax.ShapeDtypeStruct((n, hd), jnp.float32),
        grid=grid,
        in_specs=[
            pl.BlockSpec((bm, f_in), lambda i: (i, 0)),
            pl.BlockSpec((f_in, hd), lambda i: (0, 0)),
        ],
        out_specs=pl.BlockSpec((bm, hd), lambda i: (i, 0)),
        compiler_params=cparams,
    )(x, w_all)

    # Kernel B: row-tiled attention over all heads.
    out = pl.pallas_call(
        functools.partial(_attention_kernel, alpha=alpha, nheads=nheads, d=d),
        out_shape=jax.ShapeDtypeStruct((n, hd), jnp.float32),
        grid=grid,
        in_specs=[
            pl.BlockSpec((bm, n), lambda i: (i, 0)),     # adj row tile, int8
            pl.BlockSpec((bm, hd), lambda i: (i, 0)),    # h for query rows
            pl.BlockSpec((n, hd), lambda i: (0, 0)),     # h for all key rows
            pl.BlockSpec((hd, nheads), lambda i: (0, 0)),
            pl.BlockSpec((hd, nheads), lambda i: (0, 0)),
        ],
        out_specs=pl.BlockSpec((bm, hd), lambda i: (i, 0)),
        compiler_params=cparams,
    )(adj_i8, h_all, h_all, a1m, a2m)

    return out


def spgat_forward(x, adj, params, alpha):
    # F.dropout(training=False) is identity -> skipped.
    adj_i8 = (adj != 0).astype(jnp.int8)         # adj is only a 0/1 mask
    x = sp_gat_layer(x, adj_i8, params["W1"], params["a1"], alpha)
    x = sp_gat_layer(x, adj_i8, params["W2"], params["a2"], alpha)
    return x


# ---------------------------------------------------------------------------
# Pure-JAX reference (same bf16-MXU precision choices as the kernels)
# ---------------------------------------------------------------------------

def _reference_layer(x, adj, w, a, alpha):
    outs = []
    for h in range(w.shape[0]):
        wh, ah = w[h], a[h]
        d = wh.shape[1]
        hm = jnp.dot(x.astype(jnp.bfloat16), wh.astype(jnp.bfloat16),
                     preferred_element_type=jnp.float32)
        f1 = hm @ ah[0, :d]
        f2 = hm @ ah[0, d:]
        logits = f1[:, None] + f2[None, :]
        leaky = jnp.where(logits > 0, logits, alpha * logits)
        e = jnp.where(adj != 0, jnp.exp(-leaky), 0.0)
        rowsum = jnp.sum(e, axis=1, keepdims=True)
        rowsum = jnp.where(rowsum > 0, rowsum, 1.0)
        num = jnp.dot(e.astype(jnp.bfloat16), hm.astype(jnp.bfloat16),
                      preferred_element_type=jnp.float32)
        hp = num / rowsum
        outs.append(jnp.where(hp > 0, hp, jnp.exp(jnp.minimum(hp, 0.0)) - 1.0))
    return jnp.concatenate(outs, axis=1)


def _reference_forward(x, adj, params, alpha):
    x = _reference_layer(x, adj, params["W1"], params["a1"], alpha)
    x = _reference_layer(x, adj, params["W2"], params["a2"], alpha)
    return x


def _xavier_normal(key, shape, gain=1.414):
    fan_in, fan_out = shape[-2], shape[-1]
    std = gain * (2.0 / (fan_in + fan_out)) ** 0.5
    return std * jax.random.normal(key, shape, dtype=jnp.float32)


if __name__ == "__main__":
    # Small SpGAT config: nfeat=16, nhid=8, nclass=16, nheads=4, alpha=0.2, dropout=0.6 (eval).
    N, nfeat, nhid, nclass, nheads, alpha = 32, 16, 8, 16, 4, 0.2
    nclass_per_head = nclass // nheads

    key = jax.random.PRNGKey(0)
    kx, kadj, kw1, ka1, kw2, ka2 = jax.random.split(key, 6)

    x = jax.random.normal(kx, (N, nfeat), dtype=jnp.float32)

    # Random sparse adjacency with self-loops (every row has at least one edge).
    adj = (jax.random.uniform(kadj, (N, N)) < 0.2).astype(jnp.float32)
    adj = jnp.maximum(adj, jnp.eye(N, dtype=jnp.float32))

    params = {
        "W1": _xavier_normal(kw1, (nheads, nfeat, nhid)),
        "a1": _xavier_normal(ka1, (nheads, 1, 2 * nhid)),
        "W2": _xavier_normal(kw2, (nheads, nhid * nheads, nclass_per_head)),
        "a2": _xavier_normal(ka2, (nheads, 1, 2 * nclass_per_head)),
    }

    out = jax.block_until_ready(spgat_forward(x, adj, params, alpha))
    assert out.shape == (N, nclass), out.shape

    ref = jax.block_until_ready(_reference_forward(x, adj, params, alpha))
    assert jnp.allclose(out, ref, rtol=2e-3, atol=2e-3), \
        float(jnp.max(jnp.abs(out - ref)))

    print("KERNEL_OK")
</pallas_src>

<mosaic_0001>
module attributes {stable_mosaic.version = 11 : i64} {
  func.func @_project_kernel(%arg0: i32, %arg1: memref<32x16xf32, #tpu.memory_space<vmem>>, %arg2: memref<16x32xf32, #tpu.memory_space<vmem>>, %arg3: memref<32x32xf32, #tpu.memory_space<vmem>>) attributes {dimension_semantics = [#tpu.dimension_semantics<parallel>], iteration_bounds = array<i64: 1>, scalar_prefetch = 0 : i64, scratch_operands = 0 : i64, tpu.core_type = #tpu.core_type<tc>, window_params = [{transform_indices = @transform_0, window_bounds = array<i64: 32, 16>}, {pipeline_mode = #tpu.pipeline_mode<synchronous>, transform_indices = @transform_1, window_bounds = array<i64: 16, 32>}, {transform_indices = @transform_2, window_bounds = array<i64: 32, 32>}]} {
    %c0 = arith.constant 0 : index
    %c0_0 = arith.constant 0 : index
    %0 = vector.load %arg1[%c0, %c0_0] : memref<32x16xf32, #tpu.memory_space<vmem>>, vector<32x16xf32>
    %1 = arith.truncf %0 : vector<32x16xf32> to vector<32x16xbf16>
    %c0_1 = arith.constant 0 : index
    %c0_2 = arith.constant 0 : index
    %2 = vector.load %arg2[%c0_1, %c0_2] : memref<16x32xf32, #tpu.memory_space<vmem>>, vector<16x32xf32>
    %3 = arith.truncf %2 : vector<16x32xf32> to vector<16x32xbf16>
    %cst = arith.constant dense<0.000000e+00> : vector<32x32xf32>
    %4 = tpu.matmul %1, %3, %cst {dimension_numbers = #tpu.dot_dimension_numbers<[1], [0], [0], [1], [0, 0, 1, 1], [], []>} : vector<32x16xbf16>, vector<16x32xbf16>, vector<32x32xf32> -> vector<32x32xf32>
    %c0_3 = arith.constant 0 : index
    %c0_4 = arith.constant 0 : index
    %5 = vector.load %arg3[%c0_3, %c0_4] : memref<32x32xf32, #tpu.memory_space<vmem>>, vector<32x32xf32>
    tpu.vector_store %arg3[%c0_3, %c0_4], %4 {strides = array<i32>} : memref<32x32xf32, #tpu.memory_space<vmem>>, vector<32x32xf32>,
    return
  }
  func.func @transform_0(%arg0: i32) -> (i32, i32) {
    %c0_i32 = arith.constant 0 : i32
    %c0_i32_0 = arith.constant 0 : i32
    return %arg0, %c0_i32 : i32, i32
  }
  func.func @transform_1(%arg0: i32) -> (i32, i32) {
    %c0_i32 = arith.constant 0 : i32
    %c0_i32_0 = arith.constant 0 : i32
    %c0_i32_1 = arith.constant 0 : i32
    return %c0_i32, %c0_i32_0 : i32, i32
  }
  func.func @transform_2(%arg0: i32) -> (i32, i32) {
    %c0_i32 = arith.constant 0 : i32
    %c0_i32_0 = arith.constant 0 : i32
    return %arg0, %c0_i32 : i32, i32
  }
}

</mosaic_0001>

<llo_original>
// kernel: tpu_custom_call.1
$region0: #{tpu_custom_call.1}
  #allocation0 [shape = 'u32[]', space=smem, size = 0x4, offset = 0x4, fixed_abs, tag = 'smem constant byte address 0x4 - core index']
  #allocation1 [shape = 'u32[144,128]{1,0:T(1,128)}', space=vmem, size = 0x12000, scoped, tag = 'internal scratch']
  %s0 = inlined_call_operand.vmem [shape: f32[32,16], index: 0, kind: input, shape index: {}]
  %s1 = inlined_call_operand.vmem [shape: f32[16,32], index: 1, kind: input, shape index: {}]
  %s2 = inlined_call_operand.hbm [shape: f32[32,32], index: 2, kind: output, shape index: {}]
  %s3 = sld [smem:[#allocation0]]
  $region18: #{tpu_custom_call.1} parent=0
    _
  %s5 = ssub.s32 1, %s3
  %s6 = scalar_select 0, %s5, %s3
  $region1: #{tpu_custom_call.1} parent=0
    #allocation2 [shape = 'u8[16384]{0}', space=vmem, size = 0x4000, scoped, tag = 'output window, operand 0, single buffered']
    #allocation3 [shape = 's32[1]{0}', space=sflag, size = 0x4, scoped, tag = 'scoped memory for tpu_custom_call.1']
    %7 = vsyncpa [#allocation3], 0
    // Predicated region
    $region2: #{tpu_custom_call.1} parent=1 // pred_check
      _
    $region3: #{tpu_custom_call.1} parent=1 // pred_check_branch
      %9 = sbr.rel (0) target = $region5
    $region4: #{tpu_custom_call.1} parent=1 // pred_region
      _
    $region5: #{tpu_custom_call.1} parent=1 // pred_fallthru
      _
    // Predicated region
    $region6: #{tpu_custom_call.1} parent=1 // pred_check
      _
    $region7: #{tpu_custom_call.1} parent=1 // pred_check_branch
      %11 = sbr.rel (0) target = $region9
    $region8: #{tpu_custom_call.1} parent=1 // pred_region
      _
    $region9: #{tpu_custom_call.1} parent=1 // pred_fallthru
      _
    %v13 = vld [vmem:[%s0] sm:$0xff]
    %v14 = vld [vmem:[%s0 + $0x8] sm:$0xff]
    %v15 = vld [vmem:[%s0 + $0x10] sm:$0xff]
    %v16 = vld [vmem:[%s0 + $0x18] sm:$0xff]
    %v17 = vpack.c.bf16 %v14, %v13
    %v18 = vpack.c.bf16 %v16, %v15
    %v19 = vld [vmem:[%s1] sm:$0xff]
    %v20 = vld [vmem:[%s1 + $0x8] sm:$0xff]
    %v21 = vpack.c.bf16 %v20, %v19
    %vm22 = vcmask 130048
    %v24 = vsel %vm22, %v17, 0
    %v27 = vsel %vm22, %v18, 0
    %29 = vmatprep.subr.bf16.mxu0 0
    %30 = vmatpush1.bf16.msra.mxu0 0
    %31 = vmatprep.subr.bf16.mxu0 0
    %32 = vmatpush1.bf16.msra.mxu0 0
    %33 = vmatprep.subr.bf16.mxu0 0
    %34 = vmatpush1.bf16.msra.mxu0 0
    %35 = vmatprep.subr.bf16.mxu0 0
    %36 = vmatpush1.bf16.msra.mxu0 0
    %37 = vmatprep.subr.bf16.mxu0 0
    %38 = vmatpush1.bf16.msra.mxu0 0
    %39 = vmatprep.subr.bf16.mxu0 0
    %40 = vmatpush1.bf16.msra.mxu0 0
    %41 = vmatprep.subr.bf16.mxu0 0
    %42 = vmatpush1.bf16.msra.mxu0 0
    %43 = vmatprep.subr.bf16.mxu0 0
    %44 = vmatpush1.bf16.msra.mxu0 %v21
    %45 = vmatprep.subr.bf16.mxu0 0
    %46 = vmatpush2.bf16.msra.mxu0 0
    %47 = vmatprep.subr.bf16.mxu0 0
    %48 = vmatpush2.bf16.msra.mxu0 0
    %49 = vmatprep.subr.bf16.mxu0 0
    %50 = vmatpush2.bf16.msra.mxu0 0
    %51 = vmatprep.subr.bf16.mxu0 0
    %52 = vmatpush2.bf16.msra.mxu0 0
    %53 = vmatprep.subr.bf16.mxu0 0
    %54 = vmatpush2.bf16.msra.mxu0 0
    %55 = vmatprep.subr.bf16.mxu0 0
    %56 = vmatpush2.bf16.msra.mxu0 0
    %57 = vmatprep.subr.bf16.mxu0 0
    %58 = vmatpush2.bf16.msra.mxu0 0
    %59 = vmatprep.subr.bf16.mxu0 0
    %60 = vmatpush2.bf16.msra.mxu0 0
    %61 = vmatprep.mubr.bf16.mxu0 0
    %62 = vmatmul.mubr.bf16.gmra.mxu0 %v24
    %v63 = vpop.f32.mrf.mxu0
    %v64 = vadd.f32 0.0, %v63
    %v65 = vpop.f32.mrf.mxu0
    %v66 = vpop.f32.mrf.mxu0
    %v67 = vadd.f32 0.0, %v66
    %v68 = vpop.f32.mrf.mxu0
    %69 = vmatprep.mubr.bf16.mxu0 0
    %70 = vmatmul.mubr.bf16.gmra.mxu0 %v27
    %v71 = vpop.f32.mrf.mxu0
    %v72 = vadd.f32 0.0, %v71
    %v73 = vpop.f32.mrf.mxu0
    %v74 = vpop.f32.mrf.mxu0
    %v75 = vadd.f32 0.0, %v74
    %v76 = vpop.f32.mrf.mxu0
    %77 = vdwg.mxu0
    %vm78 = vcmask 261120
    %79 = vst.msk [vmem:[#allocation2] sm:$0xff] %vm78, %v64
    %80 = vst.msk [vmem:[#allocation2 + $0x8] sm:$0xff] %vm78, %v67
    %81 = vst.msk [vmem:[#allocation2 + $0x10] sm:$0xff] %vm78, %v72
    %82 = vst.msk [vmem:[#allocation2 + $0x18] sm:$0xff] %vm78, %v75
    // Predicated region
    $region10: #{tpu_custom_call.1} parent=1 // pred_check
      _
    $region11: #{tpu_custom_call.1} parent=1 // pred_check_branch
      %84 = sbr.rel (0) target = $region13
    $region12: #{tpu_custom_call.1} parent=1 // pred_region
      %s86 = ssub.s32 512, 512
      %87 = vsyncadd [#allocation3], %s86
      %s88 = sshll.u32 [#allocation2], 4
      %s89 = int_to_ptr.vmem [resolvable:$true] %s88
      %94 = dma.vmem_to_hbm [thread:$0]  %s89, 512, %s2, [#allocation3], 128, 128, 8
    $region13: #{tpu_custom_call.1} parent=1 // pred_fallthru
      _
    // Predicated region
    $region14: #{tpu_custom_call.1} parent=1 // pred_check
      _
    $region15: #{tpu_custom_call.1} parent=1 // pred_check_branch
      %96 = sbr.rel (0) target = $region17
    $region16: #{tpu_custom_call.1} parent=1 // pred_region
      %97 = dma.done [#allocation3], 512
    $region17: #{tpu_custom_call.1} parent=1 // pred_fallthru
      _
    %98 = vsyncpa [#allocation3], 1

</llo_original>
